<compile_context>
chip_gen: v7x
topology: tpu7x:2x2x1
jax: 0.10.0
libtpu: 0.0.40
codegen_flags: <defaults>
</compile_context>

<pallas_src>
import functools

import jax
import jax.numpy as jnp
from jax.experimental import pallas as pl
from jax.experimental.pallas import tpu as pltpu


def _gap_kernel(x_ref, o_ref, *, hw, p, inv_hw):
    """x_ref: (tile_r, p*hw) tile in VMEM; o_ref: (tile_r, p).

    Each VMEM row holds p original rows side by side; column c of the output
    is the mean of lanes [c*hw, (c+1)*hw) of that VMEM row.
    """
    x = x_ref[...]
    if p == 1:
        # Plain cross-lane reduce (XLU) with f32 accumulation; no explicit
        # full-tile f32 temp.
        s = jnp.sum(x, axis=1, keepdims=True, dtype=jnp.float32)
    else:
        # p lane-segment sums as one small MXU matmul against a block-diagonal
        # ones matrix (MXU is idle in this mem-bound kernel).
        L = p * hw
        r = jax.lax.broadcasted_iota(jnp.int32, (L, p), 0)
        c = jax.lax.broadcasted_iota(jnp.int32, (L, p), 1)
        seg = ((r // hw) == c).astype(x.dtype)
        s = jnp.dot(x, seg, preferred_element_type=jnp.float32)
    o_ref[...] = (s * inv_hw).astype(o_ref.dtype)


def _choose_pack(rows, hw):
    """Rows packed per 128-lane VMEM row (only for hw < 128).

    p is the largest value with p*hw <= 128 that also divides rows, so the
    wrapper reshape stays a free view of contiguous memory (no padding copy).
    """
    if hw >= 128:
        return 1
    p_max = min(128 // hw, rows)
    for p in range(p_max, 1, -1):
        if rows % p == 0:
            return p
    return 1


def _choose_tile_r(rows, width, itemsize):
    """Row-tile size targeting ~8 MiB (f32-equivalent) per input block.

    Counts the lane padding ceil(width/128)*128 and charges 4 B/elem worst
    case (covers an in-kernel widen for sub-32-bit dtypes). Double-buffered
    footprint (2x block + small temps) stays well under the 48 MiB
    vmem_limit_bytes set below on every TPU generation.
    """
    lanes = ((width + 127) // 128) * 128
    bytes_per_row = lanes * max(int(itemsize), 4)
    target_bytes = 8 * 1024 * 1024
    tile_r = max(8, (target_bytes // bytes_per_row) // 8 * 8)
    if tile_r >= rows:
        return rows          # full row extent: single block, always legal
    return tile_r            # multiple of 8; ragged last block is safe


def global_avg_pool2d(x, tile_r=None):
    """x: (N, C, H, W) -> (N, C, 1, 1), mean over H*W per (n, c)."""
    N, C, H, W = x.shape
    rows = N * C
    hw = H * W

    p = _choose_pack(rows, hw)
    rows_p = rows // p
    width = p * hw
    x2 = x.reshape(rows_p, width)          # free view of contiguous NCHW data

    itemsize = jnp.dtype(x.dtype).itemsize
    if tile_r is None:
        tile_r = _choose_tile_r(rows_p, width, itemsize)
    grid_r = pl.cdiv(rows_p, tile_r)

    out = pl.pallas_call(
        functools.partial(_gap_kernel, hw=hw, p=p, inv_hw=1.0 / hw),
        out_shape=jax.ShapeDtypeStruct((rows_p, p), x.dtype),
        grid=(grid_r,),
        # Full width per block so no cross-step accumulation is needed; tile
        # only the independent rows axis (double-buffered DMA).
        in_specs=[pl.BlockSpec((tile_r, width), lambda i: (i, 0))],
        out_specs=pl.BlockSpec((tile_r, p), lambda i: (i, 0)),
        compiler_params=pltpu.CompilerParams(
            # Rows are fully independent -> shard across multi-TC chips;
            # neutral on single-TC v5e/v6e.
            dimension_semantics=("parallel",),
            # Raise the scoped VMEM limit so the 8 MiB double-buffered blocks
            # fit (v5e default is only 16 MiB); 48 MiB keeps headroom under
            # v7x's 64 MiB physical VMEM.
            vmem_limit_bytes=48 * 1024 * 1024,
        ),
        cost_estimate=pl.CostEstimate(
            flops=rows * hw,
            transcendentals=0,
            bytes_accessed=rows * hw * itemsize + rows * itemsize,
        ),
    )(x2)

    return out.reshape(N, C, 1, 1)


def _ref(x):
    N, C, _, _ = x.shape
    return jnp.mean(x.reshape(N, C, -1), axis=2).reshape(N, C, 1, 1)


if __name__ == "__main__":
    key = jax.random.PRNGKey(0)
    k0, k1, k2, k3 = jax.random.split(key, 4)

    # 1) Small NCHW feature map (the module's nominal test shape); hw=256 is
    #    lane-aligned, single block.
    x0 = jax.random.normal(k0, (2, 4, 16, 16), dtype=jnp.float32)
    y0 = global_avg_pool2d(x0)
    jax.block_until_ready(y0)
    assert y0.shape == (2, 4, 1, 1), y0.shape
    assert y0.dtype == x0.dtype, y0.dtype
    assert jnp.allclose(y0, _ref(x0), atol=1e-5, rtol=1e-5), "mismatch (small)"

    # 2) Larger map (rows=1024, hw=1024): 4 MiB block, fits in one grid step
    #    under the raised VMEM budget.
    x1 = jax.random.normal(k1, (4, 256, 32, 32), dtype=jnp.float32)
    y1 = global_avg_pool2d(x1)
    jax.block_until_ready(y1)
    assert jnp.allclose(y1, _ref(x1), atol=1e-5, rtol=1e-5), "mismatch (large)"

    # 3) Forced multi-step, ragged last row block (rows=12, tile_r=8 -> grid=2);
    #    per-row means are independent, padded output rows are discarded.
    x2 = jax.random.normal(k2, (3, 4, 16, 16), dtype=jnp.float32)
    y2 = global_avg_pool2d(x2, tile_r=8)
    jax.block_until_ready(y2)
    assert jnp.allclose(y2, _ref(x2), atol=1e-5, rtol=1e-5), "mismatch (ragged)"

    # 4) Small-spatial regime (7*7=49 < 128): packed path with p=2 rows per
    #    128-lane VMEM row and MXU segment-sum reduce.
    x3 = jax.random.normal(k3, (3, 4, 7, 7), dtype=jnp.float32)
    y3 = global_avg_pool2d(x3)
    jax.block_until_ready(y3)
    assert y3.shape == (3, 4, 1, 1), y3.shape
    assert jnp.allclose(y3, _ref(x3), atol=1e-5, rtol=1e-5), "mismatch (packed)"

    print("KERNEL_OK")
</pallas_src>

<mosaic_0001>
module attributes {stable_mosaic.version = 11 : i64} {
  func.func @_gap_kernel(%arg0: i32, %arg1: memref<8x256xf32, #tpu.memory_space<vmem>>, %arg2: memref<8x1xf32, #tpu.memory_space<vmem>>) attributes {dimension_semantics = [#tpu.dimension_semantics<parallel>], iteration_bounds = array<i64: 1>, scalar_prefetch = 0 : i64, scratch_operands = 0 : i64, tpu.core_type = #tpu.core_type<tc>, window_params = [{transform_indices = @transform_0, window_bounds = array<i64: 8, 256>}, {transform_indices = @transform_1, window_bounds = array<i64: 8, 1>}]} {
    %c0 = arith.constant 0 : index
    %c0_0 = arith.constant 0 : index
    %0 = vector.load %arg1[%c0, %c0_0] : memref<8x256xf32, #tpu.memory_space<vmem>>, vector<8x256xf32>
    %cst = arith.constant dense<0.000000e+00> : vector<8xf32>
    %1 = vector.multi_reduction <add>, %0, %cst [1] : vector<8x256xf32> to vector<8xf32>
    %2 = vector.shape_cast %1 : vector<8xf32> to vector<8x1xf32>
    %cst_1 = arith.constant 3.906250e-03 : f32
    %3 = vector.broadcast %cst_1 : f32 to vector<8x1xf32>
    %4 = arith.mulf %2, %3 : vector<8x1xf32>
    %c0_2 = arith.constant 0 : index
    %c0_3 = arith.constant 0 : index
    %5 = vector.load %arg2[%c0_2, %c0_3] : memref<8x1xf32, #tpu.memory_space<vmem>>, vector<8x1xf32>
    tpu.vector_store %arg2[%c0_2, %c0_3], %4 {strides = array<i32>} : memref<8x1xf32, #tpu.memory_space<vmem>>, vector<8x1xf32>,
    return
  }
  func.func @transform_0(%arg0: i32) -> (i32, i32) {
    %c0_i32 = arith.constant 0 : i32
    %c0_i32_0 = arith.constant 0 : i32
    return %arg0, %c0_i32 : i32, i32
  }
  func.func @transform_1(%arg0: i32) -> (i32, i32) {
    %c0_i32 = arith.constant 0 : i32
    %c0_i32_0 = arith.constant 0 : i32
    return %arg0, %c0_i32 : i32, i32
  }
}

</mosaic_0001>

<llo_original>
// kernel: tpu_custom_call.1
$region0: #{tpu_custom_call.1}
  #allocation0 [shape = 'u32[]', space=smem, size = 0x4, offset = 0x4, fixed_abs, tag = 'smem constant byte address 0x4 - core index']
  #allocation1 [shape = 'u32[144,128]{1,0:T(1,128)}', space=vmem, size = 0x12000, scoped, tag = 'internal scratch']
  %s0 = inlined_call_operand.hbm [shape: f32[8,256], index: 0, kind: input, shape index: {}]
  %s1 = inlined_call_operand.vmem [shape: f32[8,1], index: 1, kind: output, shape index: {}]
  %s2 = sld [smem:[#allocation0]]
  $region18: #{tpu_custom_call.1} parent=0
    _
  %s4 = ssub.s32 1, %s2
  %s5 = scalar_select 0, %s4, %s2
  $region1: #{tpu_custom_call.1} parent=0
    #allocation2 [shape = 'u8[8192]{0}', space=vmem, size = 0x2000, scoped, tag = 'input window, operand 0, single buffered']
    #allocation3 [shape = 's32[1]{0}', space=sflag, size = 0x4, scoped, tag = 'scoped memory for tpu_custom_call.1']
    %6 = vsyncpa [#allocation3], 0
    // Predicated region
    $region2: #{tpu_custom_call.1} parent=1 // pred_check
      _
    $region3: #{tpu_custom_call.1} parent=1 // pred_check_branch
      %8 = sbr.rel (0) target = $region5
    $region4: #{tpu_custom_call.1} parent=1 // pred_region
      %s10 = ssub.s32 256, 256
      %11 = vsyncadd [#allocation3], %s10
      %s13 = sshll.u32 [#allocation2], 4
      %s14 = int_to_ptr.vmem [resolvable:$true] %s13
      %16 = dma.hbm_to_vmem [thread:$0]  %s0, 256, %s14, [#allocation3]
    $region5: #{tpu_custom_call.1} parent=1 // pred_fallthru
      _
    // Predicated region
    $region6: #{tpu_custom_call.1} parent=1 // pred_check
      _
    $region7: #{tpu_custom_call.1} parent=1 // pred_check_branch
      %18 = sbr.rel (0) target = $region9
    $region8: #{tpu_custom_call.1} parent=1 // pred_region
      %19 = dma.done [#allocation3], 256
    $region9: #{tpu_custom_call.1} parent=1 // pred_fallthru
      _
    %v20 = vld [vmem:[#allocation2] sm:$0xff]
    %v21 = vld [vmem:[#allocation2 + $0x8] sm:$0xff]
    %v22 = vadd.f32 %v20, %v21
    %23 = vadd.xlane.f32.xlu0 %v22
    %v24 = vpop.xlane.xlu0 %23
    %v25 = vmul.f32 %v24, 0.00390625
    %vm26 = vcmask 7168
    %27 = vst.msk [vmem:[%s1] sm:$0xff] %vm26, %v25
    // Predicated region
    $region10: #{tpu_custom_call.1} parent=1 // pred_check
      _
    $region11: #{tpu_custom_call.1} parent=1 // pred_check_branch
      %29 = sbr.rel (0) target = $region13
    $region12: #{tpu_custom_call.1} parent=1 // pred_region
      _
    $region13: #{tpu_custom_call.1} parent=1 // pred_fallthru
      _
    // Predicated region
    $region14: #{tpu_custom_call.1} parent=1 // pred_check
      _
    $region15: #{tpu_custom_call.1} parent=1 // pred_check_branch
      %31 = sbr.rel (0) target = $region17
    $region16: #{tpu_custom_call.1} parent=1 // pred_region
      _
    $region17: #{tpu_custom_call.1} parent=1 // pred_fallthru
      _
    %32 = vsyncpa [#allocation3], 1

</llo_original>
